<compile_context>
chip_gen: v7x
topology: tpu7x:2x2x1
jax: 0.10.0
libtpu: 0.0.40
codegen_flags: <defaults>
</compile_context>

<pallas_src>
import jax
import jax.numpy as jnp
from jax.experimental import pallas as pl
from jax.experimental.pallas import tpu as pltpu


def _spatial_attention_kernel(x_ref, w_ref, b_ref, o_ref):
    # x_ref: (Nb, C, L)   VMEM
    # w_ref: (Cout*2*3,)  SMEM   flattened Conv1d weight, (cout, cin, k) row-major
    # b_ref: (Cout,)      SMEM
    # o_ref: (Nb, Cout, L) VMEM
    Nb, C, L = x_ref.shape
    Cout = o_ref.shape[1]

    x = x_ref[...]                                                    # (Nb, C, L)

    # Channel reductions (sublane reduce per batch tile).  The mean-sum
    # accumulates in f32 without materializing a full f32 copy of the slab.
    avg = jnp.sum(x, axis=1, dtype=jnp.float32) * (1.0 / C)          # (Nb, L)
    mx = jnp.max(x, axis=1).astype(jnp.float32)                      # (Nb, L)

    # Stack so one roll/mask pair serves both conv input channels.
    am = jnp.concatenate([avg, mx], axis=0)                          # (2*Nb, L)

    lane = jax.lax.broadcasted_iota(jnp.int32, (2 * Nb, L), 1)
    zero = jnp.zeros_like(am)
    # roll by +1 lane  => value from l-1 ; lane 0 has no left neighbour (pad=1)
    am_m1 = jnp.where(lane >= 1, pltpu.roll(am, shift=1, axis=1), zero)
    # roll by L-1 lanes => value from l+1 ; last lane has no right neighbour
    am_p1 = jnp.where(lane <= L - 2, pltpu.roll(am, shift=L - 1, axis=1), zero)

    # taps[t] matches flattened weight index c*6 + t  (cin-major, then k)
    taps = (am_m1[:Nb], am[:Nb], am_p1[:Nb],     # cin=0 (avg): k = -1, 0, +1
            am_m1[Nb:], am[Nb:], am_p1[Nb:])     # cin=1 (max): k = -1, 0, +1

    rows = []
    for c in range(Cout):                        # Cout is tiny & static
        acc = taps[0] * w_ref[c * 6 + 0]
        for t in range(1, 6):
            acc = acc + taps[t] * w_ref[c * 6 + t]
        rows.append(jax.nn.sigmoid(acc + b_ref[c])[:, None, :])      # (Nb, 1, L)

    # Single sublane-interleave relayout + one lane-dense store.
    o_ref[...] = jnp.concatenate(rows, axis=1).astype(o_ref.dtype)   # (Nb, Cout, L)


def spatial_attention(x, weight, bias):
    """x: (N, C, L), weight: (Cout, 2, 3), bias: (Cout,) -> sigmoid(conv1d(avg||max))."""
    N, C, L = x.shape
    Cout = weight.shape[0]

    # Batch rows per grid step: fill the 8 (f32) / 16 (bf16) sublanes of a vreg.
    sub = 16 if x.dtype == jnp.bfloat16 else 8
    Nb = min(sub, N)
    n_blocks = -(-N // Nb)                 # cdiv
    Npad = n_blocks * Nb
    x_in = x if Npad == N else jnp.pad(x, ((0, Npad - N), (0, 0), (0, 0)))

    w_flat = weight.reshape(-1).astype(jnp.float32)   # (Cout*2*3,) scalars -> SMEM
    b_flat = bias.reshape(-1).astype(jnp.float32)     # (Cout,)             -> SMEM

    out = pl.pallas_call(
        _spatial_attention_kernel,
        out_shape=jax.ShapeDtypeStruct((Npad, Cout, L), x.dtype),
        grid=(n_blocks,),
        in_specs=[
            pl.BlockSpec((Nb, C, L), lambda n: (n, 0, 0)),
            pl.BlockSpec(memory_space=pltpu.MemorySpace.SMEM),
            pl.BlockSpec(memory_space=pltpu.MemorySpace.SMEM),
        ],
        out_specs=pl.BlockSpec((Nb, Cout, L), lambda n: (n, 0, 0)),
        compiler_params=pltpu.CompilerParams(dimension_semantics=("parallel",)),
    )(x_in, w_flat, b_flat)
    return out if Npad == N else out[:N]


def _reference(x, weight, bias):
    avg = jnp.mean(x, axis=1, keepdims=True)
    mx = jnp.max(x, axis=1, keepdims=True)
    cat = jnp.concatenate([avg, mx], axis=1)                     # (N, 2, L)
    out = jax.lax.conv_general_dilated(
        cat, weight, window_strides=(1,), padding=((1, 1),),
        dimension_numbers=("NCH", "OIH", "NCH"))
    return jax.nn.sigmoid(out + bias[None, :, None])


if __name__ == "__main__":
    # Module params: SpatialAttention(in_channels=1, out_channels=4)
    out_channels = 4
    kernel_size = 3
    # N=10 exercises the Nb=8 batch tiling (2 grid steps) including the padded
    # ragged last block; L is a multiple of 128 so the store is lane-dense.
    N, C, L = 10, 4, 128

    key = jax.random.PRNGKey(0)
    kx, kw, kb = jax.random.split(key, 3)

    x = jax.random.normal(kx, (N, C, L), dtype=jnp.float32)

    # PyTorch-style Conv1d init: uniform(-1/sqrt(fan_in), +1/sqrt(fan_in))
    fan_in = 2 * kernel_size
    bound = 1.0 / (fan_in ** 0.5)
    weight = jax.random.uniform(kw, (out_channels, 2, kernel_size),
                                minval=-bound, maxval=bound, dtype=jnp.float32)
    bias = jax.random.uniform(kb, (out_channels,),
                              minval=-bound, maxval=bound, dtype=jnp.float32)

    out = spatial_attention(x, weight, bias)
    out = jax.block_until_ready(out)

    ref = _reference(x, weight, bias)
    assert out.shape == (N, out_channels, L)
    assert jnp.allclose(out, ref, atol=1e-5, rtol=1e-5)

    print("KERNEL_OK")
</pallas_src>

<mosaic_0001>
module attributes {stable_mosaic.version = 11 : i64} {
  func.func @_spatial_attention_kernel(%arg0: i32, %arg1: memref<8x4x128xf32, #tpu.memory_space<vmem>>, %arg2: memref<24xf32, #tpu.memory_space<smem>>, %arg3: memref<4xf32, #tpu.memory_space<smem>>, %arg4: memref<8x4x128xf32, #tpu.memory_space<vmem>>) attributes {dimension_semantics = [#tpu.dimension_semantics<parallel>], iteration_bounds = array<i64: 2>, scalar_prefetch = 0 : i64, scratch_operands = 0 : i64, tpu.core_type = #tpu.core_type<tc>, window_params = [{transform_indices = @transform_0, window_bounds = array<i64: 8, 4, 128>}, {transform_indices = @transform_1, window_bounds = array<i64: 24>}, {transform_indices = @transform_2, window_bounds = array<i64: 4>}, {transform_indices = @transform_3, window_bounds = array<i64: 8, 4, 128>}]} {
    %c0 = arith.constant 0 : index
    %c0_0 = arith.constant 0 : index
    %c0_1 = arith.constant 0 : index
    %0 = vector.load %arg1[%c0, %c0_0, %c0_1] : memref<8x4x128xf32, #tpu.memory_space<vmem>>, vector<8x4x128xf32>
    %cst = arith.constant dense<0.000000e+00> : vector<8x128xf32>
    %1 = vector.multi_reduction <add>, %0, %cst [1] : vector<8x4x128xf32> to vector<8x128xf32>
    %cst_2 = arith.constant 2.500000e-01 : f32
    %2 = vector.broadcast %cst_2 : f32 to vector<8x128xf32>
    %3 = arith.mulf %1, %2 : vector<8x128xf32>
    %cst_3 = arith.constant dense<0xFF800000> : vector<8x128xf32>
    %4 = vector.multi_reduction <maximumf>, %0, %cst_3 [1] : vector<8x4x128xf32> to vector<8x128xf32>
    %5 = tpu.concatenate %3, %4 in 0 : vector<8x128xf32>, vector<8x128xf32> -> vector<16x128xf32>
    %6 = tpu.iota {dimensions = array<i32: 1>} : vector<16x128xi32>
    %cst_4 = arith.constant 0.000000e+00 : f32
    %7 = vector.broadcast %cst_4 : f32 to vector<16x128xf32>
    %c1_i32 = arith.constant 1 : i32
    %8 = vector.broadcast %c1_i32 : i32 to vector<16x128xi32>
    %9 = arith.cmpi sge, %6, %8 : vector<16x128xi32>
    %c1_i32_5 = arith.constant 1 : i32
    %10 = tpu.dynamic_rotate %5 by %c1_i32_5 dim 1 : vector<16x128xf32>, i32 -> vector<16x128xf32>
    %11 = arith.select %9, %10, %7 : vector<16x128xi1>, vector<16x128xf32>
    %c126_i32 = arith.constant 126 : i32
    %12 = vector.broadcast %c126_i32 : i32 to vector<16x128xi32>
    %13 = arith.cmpi sle, %6, %12 : vector<16x128xi32>
    %c127_i32 = arith.constant 127 : i32
    %14 = tpu.dynamic_rotate %5 by %c127_i32 dim 1 : vector<16x128xf32>, i32 -> vector<16x128xf32>
    %15 = arith.select %13, %14, %7 : vector<16x128xi1>, vector<16x128xf32>
    %16 = vector.extract_strided_slice %11 {offsets = [0, 0], sizes = [8, 128], strides = [1, 1]} : vector<16x128xf32> to vector<8x128xf32>
    %17 = vector.extract_strided_slice %5 {offsets = [0, 0], sizes = [8, 128], strides = [1, 1]} : vector<16x128xf32> to vector<8x128xf32>
    %18 = vector.extract_strided_slice %15 {offsets = [0, 0], sizes = [8, 128], strides = [1, 1]} : vector<16x128xf32> to vector<8x128xf32>
    %19 = vector.extract_strided_slice %11 {offsets = [8, 0], sizes = [8, 128], strides = [1, 1]} : vector<16x128xf32> to vector<8x128xf32>
    %20 = vector.extract_strided_slice %5 {offsets = [8, 0], sizes = [8, 128], strides = [1, 1]} : vector<16x128xf32> to vector<8x128xf32>
    %21 = vector.extract_strided_slice %15 {offsets = [8, 0], sizes = [8, 128], strides = [1, 1]} : vector<16x128xf32> to vector<8x128xf32>
    %c0_6 = arith.constant 0 : index
    %22 = memref.load %arg2[%c0_6] : memref<24xf32, #tpu.memory_space<smem>>
    %23 = vector.broadcast %22 : f32 to vector<8x128xf32>
    %24 = arith.mulf %16, %23 : vector<8x128xf32>
    %c1 = arith.constant 1 : index
    %25 = memref.load %arg2[%c1] : memref<24xf32, #tpu.memory_space<smem>>
    %26 = vector.broadcast %25 : f32 to vector<8x128xf32>
    %27 = arith.mulf %17, %26 : vector<8x128xf32>
    %28 = arith.addf %24, %27 : vector<8x128xf32>
    %c2 = arith.constant 2 : index
    %29 = memref.load %arg2[%c2] : memref<24xf32, #tpu.memory_space<smem>>
    %30 = vector.broadcast %29 : f32 to vector<8x128xf32>
    %31 = arith.mulf %18, %30 : vector<8x128xf32>
    %32 = arith.addf %28, %31 : vector<8x128xf32>
    %c3 = arith.constant 3 : index
    %33 = memref.load %arg2[%c3] : memref<24xf32, #tpu.memory_space<smem>>
    %34 = vector.broadcast %33 : f32 to vector<8x128xf32>
    %35 = arith.mulf %19, %34 : vector<8x128xf32>
    %36 = arith.addf %32, %35 : vector<8x128xf32>
    %c4 = arith.constant 4 : index
    %37 = memref.load %arg2[%c4] : memref<24xf32, #tpu.memory_space<smem>>
    %38 = vector.broadcast %37 : f32 to vector<8x128xf32>
    %39 = arith.mulf %20, %38 : vector<8x128xf32>
    %40 = arith.addf %36, %39 : vector<8x128xf32>
    %c5 = arith.constant 5 : index
    %41 = memref.load %arg2[%c5] : memref<24xf32, #tpu.memory_space<smem>>
    %42 = vector.broadcast %41 : f32 to vector<8x128xf32>
    %43 = arith.mulf %21, %42 : vector<8x128xf32>
    %44 = arith.addf %40, %43 : vector<8x128xf32>
    %c0_7 = arith.constant 0 : index
    %45 = memref.load %arg3[%c0_7] : memref<4xf32, #tpu.memory_space<smem>>
    %46 = vector.broadcast %45 : f32 to vector<8x128xf32>
    %47 = arith.addf %44, %46 : vector<8x128xf32>
    %48 = arith.negf %47 : vector<8x128xf32>
    %49 = math.exp %48 : vector<8x128xf32>
    %cst_8 = arith.constant 1.000000e+00 : f32
    %50 = vector.broadcast %cst_8 : f32 to vector<8x128xf32>
    %51 = arith.addf %50, %49 : vector<8x128xf32>
    %52 = arith.divf %50, %51 : vector<8x128xf32>
    %53 = vector.shape_cast %52 : vector<8x128xf32> to vector<8x1x128xf32>
    %c6 = arith.constant 6 : index
    %54 = memref.load %arg2[%c6] : memref<24xf32, #tpu.memory_space<smem>>
    %55 = vector.broadcast %54 : f32 to vector<8x128xf32>
    %56 = arith.mulf %16, %55 : vector<8x128xf32>
    %c7 = arith.constant 7 : index
    %57 = memref.load %arg2[%c7] : memref<24xf32, #tpu.memory_space<smem>>
    %58 = vector.broadcast %57 : f32 to vector<8x128xf32>
    %59 = arith.mulf %17, %58 : vector<8x128xf32>
    %60 = arith.addf %56, %59 : vector<8x128xf32>
    %c8 = arith.constant 8 : index
    %61 = memref.load %arg2[%c8] : memref<24xf32, #tpu.memory_space<smem>>
    %62 = vector.broadcast %61 : f32 to vector<8x128xf32>
    %63 = arith.mulf %18, %62 : vector<8x128xf32>
    %64 = arith.addf %60, %63 : vector<8x128xf32>
    %c9 = arith.constant 9 : index
    %65 = memref.load %arg2[%c9] : memref<24xf32, #tpu.memory_space<smem>>
    %66 = vector.broadcast %65 : f32 to vector<8x128xf32>
    %67 = arith.mulf %19, %66 : vector<8x128xf32>
    %68 = arith.addf %64, %67 : vector<8x128xf32>
    %c10 = arith.constant 10 : index
    %69 = memref.load %arg2[%c10] : memref<24xf32, #tpu.memory_space<smem>>
    %70 = vector.broadcast %69 : f32 to vector<8x128xf32>
    %71 = arith.mulf %20, %70 : vector<8x128xf32>
    %72 = arith.addf %68, %71 : vector<8x128xf32>
    %c11 = arith.constant 11 : index
    %73 = memref.load %arg2[%c11] : memref<24xf32, #tpu.memory_space<smem>>
    %74 = vector.broadcast %73 : f32 to vector<8x128xf32>
    %75 = arith.mulf %21, %74 : vector<8x128xf32>
    %76 = arith.addf %72, %75 : vector<8x128xf32>
    %c1_9 = arith.constant 1 : index
    %77 = memref.load %arg3[%c1_9] : memref<4xf32, #tpu.memory_space<smem>>
    %78 = vector.broadcast %77 : f32 to vector<8x128xf32>
    %79 = arith.addf %76, %78 : vector<8x128xf32>
    %80 = arith.negf %79 : vector<8x128xf32>
    %81 = math.exp %80 : vector<8x128xf32>
    %cst_10 = arith.constant 1.000000e+00 : f32
    %82 = vector.broadcast %cst_10 : f32 to vector<8x128xf32>
    %83 = arith.addf %82, %81 : vector<8x128xf32>
    %84 = arith.divf %82, %83 : vector<8x128xf32>
    %85 = vector.shape_cast %84 : vector<8x128xf32> to vector<8x1x128xf32>
    %c12 = arith.constant 12 : index
    %86 = memref.load %arg2[%c12] : memref<24xf32, #tpu.memory_space<smem>>
    %87 = vector.broadcast %86 : f32 to vector<8x128xf32>
    %88 = arith.mulf %16, %87 : vector<8x128xf32>
    %c13 = arith.constant 13 : index
    %89 = memref.load %arg2[%c13] : memref<24xf32, #tpu.memory_space<smem>>
    %90 = vector.broadcast %89 : f32 to vector<8x128xf32>
    %91 = arith.mulf %17, %90 : vector<8x128xf32>
    %92 = arith.addf %88, %91 : vector<8x128xf32>
    %c14 = arith.constant 14 : index
    %93 = memref.load %arg2[%c14] : memref<24xf32, #tpu.memory_space<smem>>
    %94 = vector.broadcast %93 : f32 to vector<8x128xf32>
    %95 = arith.mulf %18, %94 : vector<8x128xf32>
    %96 = arith.addf %92, %95 : vector<8x128xf32>
    %c15 = arith.constant 15 : index
    %97 = memref.load %arg2[%c15] : memref<24xf32, #tpu.memory_space<smem>>
    %98 = vector.broadcast %97 : f32 to vector<8x128xf32>
    %99 = arith.mulf %19, %98 : vector<8x128xf32>
    %100 = arith.addf %96, %99 : vector<8x128xf32>
    %c16 = arith.constant 16 : index
    %101 = memref.load %arg2[%c16] : memref<24xf32, #tpu.memory_space<smem>>
    %102 = vector.broadcast %101 : f32 to vector<8x128xf32>
    %103 = arith.mulf %20, %102 : vector<8x128xf32>
    %104 = arith.addf %100, %103 : vector<8x128xf32>
    %c17 = arith.constant 17 : index
    %105 = memref.load %arg2[%c17] : memref<24xf32, #tpu.memory_space<smem>>
    %106 = vector.broadcast %105 : f32 to vector<8x128xf32>
    %107 = arith.mulf %21, %106 : vector<8x128xf32>
    %108 = arith.addf %104, %107 : vector<8x128xf32>
    %c2_11 = arith.constant 2 : index
    %109 = memref.load %arg3[%c2_11] : memref<4xf32, #tpu.memory_space<smem>>
    %110 = vector.broadcast %109 : f32 to vector<8x128xf32>
    %111 = arith.addf %108, %110 : vector<8x128xf32>
    %112 = arith.negf %111 : vector<8x128xf32>
    %113 = math.exp %112 : vector<8x128xf32>
    %cst_12 = arith.constant 1.000000e+00 : f32
    %114 = vector.broadcast %cst_12 : f32 to vector<8x128xf32>
    %115 = arith.addf %114, %113 : vector<8x128xf32>
    %116 = arith.divf %114, %115 : vector<8x128xf32>
    %117 = vector.shape_cast %116 : vector<8x128xf32> to vector<8x1x128xf32>
    %c18 = arith.constant 18 : index
    %118 = memref.load %arg2[%c18] : memref<24xf32, #tpu.memory_space<smem>>
    %119 = vector.broadcast %118 : f32 to vector<8x128xf32>
    %120 = arith.mulf %16, %119 : vector<8x128xf32>
    %c19 = arith.constant 19 : index
    %121 = memref.load %arg2[%c19] : memref<24xf32, #tpu.memory_space<smem>>
    %122 = vector.broadcast %121 : f32 to vector<8x128xf32>
    %123 = arith.mulf %17, %122 : vector<8x128xf32>
    %124 = arith.addf %120, %123 : vector<8x128xf32>
    %c20 = arith.constant 20 : index
    %125 = memref.load %arg2[%c20] : memref<24xf32, #tpu.memory_space<smem>>
    %126 = vector.broadcast %125 : f32 to vector<8x128xf32>
    %127 = arith.mulf %18, %126 : vector<8x128xf32>
    %128 = arith.addf %124, %127 : vector<8x128xf32>
    %c21 = arith.constant 21 : index
    %129 = memref.load %arg2[%c21] : memref<24xf32, #tpu.memory_space<smem>>
    %130 = vector.broadcast %129 : f32 to vector<8x128xf32>
    %131 = arith.mulf %19, %130 : vector<8x128xf32>
    %132 = arith.addf %128, %131 : vector<8x128xf32>
    %c22 = arith.constant 22 : index
    %133 = memref.load %arg2[%c22] : memref<24xf32, #tpu.memory_space<smem>>
    %134 = vector.broadcast %133 : f32 to vector<8x128xf32>
    %135 = arith.mulf %20, %134 : vector<8x128xf32>
    %136 = arith.addf %132, %135 : vector<8x128xf32>
    %c23 = arith.constant 23 : index
    %137 = memref.load %arg2[%c23] : memref<24xf32, #tpu.memory_space<smem>>
    %138 = vector.broadcast %137 : f32 to vector<8x128xf32>
    %139 = arith.mulf %21, %138 : vector<8x128xf32>
    %140 = arith.addf %136, %139 : vector<8x128xf32>
    %c3_13 = arith.constant 3 : index
    %141 = memref.load %arg3[%c3_13] : memref<4xf32, #tpu.memory_space<smem>>
    %142 = vector.broadcast %141 : f32 to vector<8x128xf32>
    %143 = arith.addf %140, %142 : vector<8x128xf32>
    %144 = arith.negf %143 : vector<8x128xf32>
    %145 = math.exp %144 : vector<8x128xf32>
    %cst_14 = arith.constant 1.000000e+00 : f32
    %146 = vector.broadcast %cst_14 : f32 to vector<8x128xf32>
    %147 = arith.addf %146, %145 : vector<8x128xf32>
    %148 = arith.divf %146, %147 : vector<8x128xf32>
    %149 = vector.shape_cast %148 : vector<8x128xf32> to vector<8x1x128xf32>
    %150 = tpu.concatenate %53, %85, %117, %149 in 1 : vector<8x1x128xf32>, vector<8x1x128xf32>, vector<8x1x128xf32>, vector<8x1x128xf32> -> vector<8x4x128xf32>
    %c0_15 = arith.constant 0 : index
    %c0_16 = arith.constant 0 : index
    %c0_17 = arith.constant 0 : index
    %151 = vector.load %arg4[%c0_15, %c0_16, %c0_17] : memref<8x4x128xf32, #tpu.memory_space<vmem>>, vector<8x4x128xf32>
    tpu.vector_store %arg4[%c0_15, %c0_16, %c0_17], %150 {strides = array<i32>} : memref<8x4x128xf32, #tpu.memory_space<vmem>>, vector<8x4x128xf32>,
    return
  }
  func.func @transform_0(%arg0: i32) -> (i32, i32, i32) {
    %c0_i32 = arith.constant 0 : i32
    %c0_i32_0 = arith.constant 0 : i32
    %c0_i32_1 = arith.constant 0 : i32
    return %arg0, %c0_i32, %c0_i32_0 : i32, i32, i32
  }
  func.func @transform_1(%arg0: i32) -> i32 {
    %c0_i32 = arith.constant 0 : i32
    %c0_i32_0 = arith.constant 0 : i32
    return %c0_i32 : i32
  }
  func.func @transform_2(%arg0: i32) -> i32 {
    %c0_i32 = arith.constant 0 : i32
    %c0_i32_0 = arith.constant 0 : i32
    return %c0_i32 : i32
  }
  func.func @transform_3(%arg0: i32) -> (i32, i32, i32) {
    %c0_i32 = arith.constant 0 : i32
    %c0_i32_0 = arith.constant 0 : i32
    %c0_i32_1 = arith.constant 0 : i32
    return %arg0, %c0_i32, %c0_i32_0 : i32, i32, i32
  }
}

</mosaic_0001>

<llo_original>
// kernel: tpu_custom_call.1
$region0: #{tpu_custom_call.1}
  #allocation0 [shape = 'u32[]', space=smem, size = 0x4, offset = 0x4, fixed_abs, tag = 'smem constant byte address 0x4 - core index']
  #allocation1 [shape = 'u32[144,128]{1,0:T(1,128)}', space=vmem, size = 0x12000, scoped, tag = 'internal scratch']
  %s0 = inlined_call_operand.hbm [shape: f32[16,4,128], index: 0, kind: input, shape index: {}]
  %s1 = inlined_call_operand.vmem [shape: f32[24], index: 1, kind: input, shape index: {}]
  %s2 = inlined_call_operand.vmem [shape: f32[4], index: 2, kind: input, shape index: {}]
  %s3 = inlined_call_operand.hbm [shape: f32[16,4,128], index: 3, kind: output, shape index: {}]
  %s4 = sld [smem:[#allocation0]]
  $region57: #{tpu_custom_call.1} parent=0
    _
  %s6 = ssub.s32 1, %s4
  %s7 = scalar_select 0, %s6, %s4
  $region1: #{tpu_custom_call.1} parent=0
    #allocation2 [shape = 'u8[32768]{0}', space=vmem, size = 0x8000, scoped, tag = 'input window, operand 0']
    #allocation3 [shape = 's32[2]{0}', space=sflag, size = 0x8, scoped, tag = 'scoped memory for tpu_custom_call.1']
    #allocation4 [shape = 's32[2]{0}', space=sflag, size = 0x8, scoped, tag = 'scoped memory for tpu_custom_call.1']
    #allocation5 [shape = 's32[2]{0}', space=sflag, size = 0x8, scoped, tag = 'scoped memory for tpu_custom_call.1']
    #allocation6 [shape = 'u8[512]{0}', space=smem, size = 0x200, scoped, tag = 'input window, operand 1, single buffered']
    #allocation7 [shape = 'u8[512]{0}', space=smem, size = 0x200, scoped, tag = 'input window, operand 2, single buffered']
    #allocation8 [shape = 's32[1]{0}', space=sflag, size = 0x4, scoped, tag = 'scoped memory for tpu_custom_call.1']
    #allocation9 [shape = 'u8[32768]{0}', space=vmem, size = 0x8000, scoped, tag = 'output window, operand 0']
    %8 = vsyncpa [#allocation3], 0
    %s9 = scalar_lea.sflag [#allocation3], 1
    %10 = vsyncpa %s9, 0
    %11 = vsyncpa [#allocation5], 0
    %12 = vsyncpa [#allocation8], 0
    %13 = vsyncpa [#allocation4], 0
    %s14 = scalar_lea.sflag [#allocation4], 1
    %15 = vsyncpa %s14, 0
    loop: start=0, step=1, limit=4
    $region2: #{tpu_custom_call.1} parent=1 // loop_pre_header
      _
    $region3: #{tpu_custom_call.1} parent=1 // loop_header
      %s17 = sphi 0, %s21
      %p18 = scmp.ge.s32.totalorder %s17, 4
      %s27 = sphi 0, %s29
      %s30 = sphi 0, %s27
      %s31 = sphi 0, %s30
      %s47 = sphi 0, %s31
      %s51 = sphi 0, %s51
      %s53 = sphi 0, %s51
      %s54 = sphi 0, %s53
      %s68 = sphi 0, %s54
      %s72 = sphi 0, %s72
      %s74 = sphi 0, %s72
      %s75 = sphi 0, %s74
      %s89 = sphi 0, %s75
      %s95 = sphi 0, %s97
      %s98 = sphi 0, %s95
      %s99 = sphi 0, %s98
      %s115 = sphi 0, %s99
    $region4: #{tpu_custom_call.1} parent=1 // loop_header_branch
      %20 = sbr.rel (%p18) target = $region8
    $region5: #{tpu_custom_call.1} parent=1 // loop_body
      %s22 = ssub.s32 %s17, 1
      %s23 = ssub.s32 %s17, 2
      %s24 = sadd.s32 %s17, 1
      %s25 = ssub.s32 %s17, %s24
      %p26 = scmp.eq.s32.totalorder %s25, 0
      %s28 = sadd.s32 %s27, 1
      %s29 = scalar_select %p26, %s27, %s28
      %p32 = pneg %p26
      %p33 = scmp.eq.s32.totalorder %s17, 1
      %p34 = por %p32, %p33
      %p35 = scmp.ne.s32.totalorder %s27, %s30
      %p36 = scmp.eq.s32.totalorder %s17, 0
      %p37 = por %p35, %p36
      %p38 = scmp.ne.s32.totalorder %s27, %s30
      %p39 = scmp.eq.s32.totalorder %s22, 1
      %p40 = por %p38, %p39
      %p41 = scmp.ne.s32.totalorder %s30, %s31
      %p42 = scmp.eq.s32.totalorder %s22, 0
      %p43 = por %p41, %p42
      %p44 = scmp.ne.s32.totalorder %s30, %s31
      %p45 = scmp.eq.s32.totalorder %s23, 1
      %p46 = por %p44, %p45
      %p48 = scmp.ne.s32.totalorder %s31, %s47
      %p49 = scmp.eq.s32.totalorder %s23, 0
      %p50 = por %p48, %p49
      %s52 = sadd.s32 %s51, 1
      %p55 = scmp.eq.s32.totalorder %s17, 1
      %p56 = scmp.ne.s32.totalorder %s51, %s53
      %p57 = scmp.eq.s32.totalorder %s17, 0
      %p58 = por %p56, %p57
      %p59 = scmp.ne.s32.totalorder %s51, %s53
      %p60 = scmp.eq.s32.totalorder %s22, 1
      %p61 = por %p59, %p60
      %p62 = scmp.ne.s32.totalorder %s53, %s54
      %p63 = scmp.eq.s32.totalorder %s22, 0
      %p64 = por %p62, %p63
      %p65 = scmp.ne.s32.totalorder %s53, %s54
      %p66 = scmp.eq.s32.totalorder %s23, 1
      %p67 = por %p65, %p66
      %p69 = scmp.ne.s32.totalorder %s54, %s68
      %p70 = scmp.eq.s32.totalorder %s23, 0
      %p71 = por %p69, %p70
      %s73 = sadd.s32 %s72, 1
      %p76 = scmp.eq.s32.totalorder %s17, 1
      %p77 = scmp.ne.s32.totalorder %s72, %s74
      %p78 = scmp.eq.s32.totalorder %s17, 0
      %p79 = por %p77, %p78
      %p80 = scmp.ne.s32.totalorder %s72, %s74
      %p81 = scmp.eq.s32.totalorder %s22, 1
      %p82 = por %p80, %p81
      %p83 = scmp.ne.s32.totalorder %s74, %s75
      %p84 = scmp.eq.s32.totalorder %s22, 0
      %p85 = por %p83, %p84
      %p86 = scmp.ne.s32.totalorder %s74, %s75
      %p87 = scmp.eq.s32.totalorder %s23, 1
      %p88 = por %p86, %p87
      %p90 = scmp.ne.s32.totalorder %s75, %s89
      %p91 = scmp.eq.s32.totalorder %s23, 0
      %p92 = por %p90, %p91
      %s93 = ssub.s32 %s17, %s24
      %p94 = scmp.eq.s32.totalorder %s93, 0
      %s96 = sadd.s32 %s95, 1
      %s97 = scalar_select %p94, %s95, %s96
      %p100 = pneg %p94
      %p101 = scmp.eq.s32.totalorder %s17, 1
      %p102 = por %p100, %p101
      %p103 = scmp.ne.s32.totalorder %s95, %s98
      %p104 = scmp.eq.s32.totalorder %s17, 0
      %p105 = por %p103, %p104
      %p106 = scmp.ne.s32.totalorder %s95, %s98
      %p107 = scmp.eq.s32.totalorder %s22, 1
      %p108 = por %p106, %p107
      %p109 = scmp.ne.s32.totalorder %s98, %s99
      %p110 = scmp.eq.s32.totalorder %s22, 0
      %p111 = por %p109, %p110
      %p112 = scmp.ne.s32.totalorder %s98, %s99
      %p113 = scmp.eq.s32.totalorder %s23, 1
      %p114 = por %p112, %p113
      %p116 = scmp.ne.s32.totalorder %s99, %s115
      %p117 = scmp.eq.s32.totalorder %s23, 0
      %p118 = por %p116, %p117
      %p119 = scmp.le.s32.totalorder 1, %s17
      %p120 = scmp.lt.s32.totalorder %s17, 3
      %p121 = pnand %p119, %p120
      %p122 = pneg %p121
      // Predicated region
      $region9: #{tpu_custom_call.1} parent=5 // pred_check
        _
      $region10: #{tpu_custom_call.1} parent=5 // pred_check_branch
        %124 = sbr.rel (%p121) target = $region12
      $region11: #{tpu_custom_call.1} parent=5 // pred_region
        %s125 = ssub.s32 %s17, 1
        // Predicated region
        $region13: #{tpu_custom_call.1} parent=11 // pred_check
          %p126 = pneg %p64
        $region14: #{tpu_custom_call.1} parent=11 // pred_check_branch
          %128 = sbr.rel (%p126) target = $region16
        $region15: #{tpu_custom_call.1} parent=11 // pred_region
          %s130 = ssub.s32 16, 16
          %131 = vsyncadd [#allocation5], %s130
          %s133 = sshll.u32 %s1, 4
          %s134 = int_to_ptr.vmem [resolvable:$true] %s133
          %136 = dma.vmem_to_smem %s134, 16, [#allocation6], [#allocation5]
        $region16: #{tpu_custom_call.1} parent=11 // pred_fallthru
          _
        // Predicated region
        $region17: #{tpu_custom_call.1} parent=11 // pred_check
          %p137 = pneg %p85
        $region18: #{tpu_custom_call.1} parent=11 // pred_check_branch
          %139 = sbr.rel (%p137) target = $region20
        $region19: #{tpu_custom_call.1} parent=11 // pred_region
          %s141 = ssub.s32 16, 16
          %142 = vsyncadd [#allocation8], %s141
          %s144 = sshll.u32 %s2, 4
          %s145 = int_to_ptr.vmem [resolvable:$true] %s144
          %147 = dma.vmem_to_smem %s145, 16, [#allocation7], [#allocation8]
        $region20: #{tpu_custom_call.1} parent=11 // pred_fallthru
          _
      $region12: #{tpu_custom_call.1} parent=5 // pred_fallthru
        _
      %p148 = scmp.lt.s32.totalorder %s17, 2
      // Predicated region
      $region21: #{tpu_custom_call.1} parent=5 // pred_check
        %p149 = pneg %p148
      $region22: #{tpu_custom_call.1} parent=5 // pred_check_branch
        %151 = sbr.rel (%p149) target = $region24
      $region23: #{tpu_custom_call.1} parent=5 // pred_region
        // Predicated region
        $region25: #{tpu_custom_call.1} parent=23 // pred_check
          %p152 = pneg %p37
        $region26: #{tpu_custom_call.1} parent=23 // pred_check_branch
          %154 = sbr.rel (%p152) target = $region28
        $region27: #{tpu_custom_call.1} parent=23 // pred_region
          %s155 = sand.u32 %s27, 1
          %s156 = scalar_lea.sflag [#allocation3], %s155
          %s157 = sand.u32 %s27, 1
          %s158 = smul.addr %s157, 32
          %s159 = scalar_lea.vmem [#allocation2], %s158
          %s160 = smul.u32 8, %s17
          %s162 = ssub.s32 512, 512
          %163 = vsyncadd %s156, %s162
          %s164 = smul.addr %s160, 64
          %s165 = scalar_lea.hbm %s0, %s164
          %s166 = sshll.u32 %s159, 4
          %s167 = int_to_ptr.vmem [resolvable:$true] %s166
          %172 = dma.hbm_to_vmem [thread:$0]  %s165, 512, %s167, %s156, 64, 64, 4
        $region28: #{tpu_custom_call.1} parent=23 // pred_fallthru
          _
      $region24: #{tpu_custom_call.1} parent=5 // pred_fallthru
        _
      %p173 = scmp.le.s32.totalorder 1, %s17
      %p174 = scmp.lt.s32.totalorder %s17, 3
      %p175 = pnand %p173, %p174
      %p176 = pneg %p175
      // Predicated region
      $region29: #{tpu_custom_call.1} parent=5 // pred_check
        _
      $region30: #{tpu_custom_call.1} parent=5 // pred_check_branch
        %178 = sbr.rel (%p175) target = $region32
      $region31: #{tpu_custom_call.1} parent=5 // pred_region
        %s179 = ssub.s32 %s17, 1
        %s180 = sand.u32 %s30, 1
        %s181 = scalar_lea.sflag [#allocation3], %s180
        %s182 = sand.u32 %s30, 1
        %s183 = smul.addr %s182, 32
        %s184 = scalar_lea.vmem [#allocation2], %s183
        // Predicated region
        $region33: #{tpu_custom_call.1} parent=31 // pred_check
          %p185 = pneg %p43
        $region34: #{tpu_custom_call.1} parent=31 // pred_check_branch
          %187 = sbr.rel (%p185) target = $region36
        $region35: #{tpu_custom_call.1} parent=31 // pred_region
          %188 = dma.done %s181, 512
        $region36: #{tpu_custom_call.1} parent=31 // pred_fallthru
          _
        // Predicated region
        $region37: #{tpu_custom_call.1} parent=31 // pred_check
          %p189 = pneg %p64
        $region38: #{tpu_custom_call.1} parent=31 // pred_check_branch
          %191 = sbr.rel (%p189) target = $region40
        $region39: #{tpu_custom_call.1} parent=31 // pred_region
          %192 = dma.done [#allocation5], 16
        $region40: #{tpu_custom_call.1} parent=31 // pred_fallthru
          _
        // Predicated region
        $region41: #{tpu_custom_call.1} parent=31 // pred_check
          %p193 = pneg %p85
        $region42: #{tpu_custom_call.1} parent=31 // pred_check_branch
          %195 = sbr.rel (%p193) target = $region44
        $region43: #{tpu_custom_call.1} parent=31 // pred_region
          %196 = dma.done [#allocation8], 16
        $region44: #{tpu_custom_call.1} parent=31 // pred_fallthru
          _
        %197 = sfence
        %s198 = sand.u32 %s30, 1
        %s199 = scalar_lea.sflag [#allocation3], %s198
        %s200 = sand.u32 %s30, 1
        %s201 = smul.addr %s200, 32
        %s202 = scalar_lea.vmem [#allocation2], %s201
        %p203 = pneg %p43
        %p204 = pneg %p40
        %p205 = pneg %p64
        %p206 = pneg %p61
        %p207 = pneg %p85
        %p208 = pneg %p82
        %p209 = pneg %p111
        %p210 = pneg %p108
        %s211 = sand.u32 %s98, 1
        %s212 = scalar_lea.sflag [#allocation4], %s211
        %s213 = sand.u32 %s98, 1
        %s214 = smul.addr %s213, 32
        %s215 = scalar_lea.vmem [#allocation9], %s214
        %s216 = smul.u32 8, %s22
        %s217 = smul.u32 8, %s22
        %v218 = vld [vmem:[%s184] sm:$0xf]
        %v219 = vld [vmem:[%s184 + $0x4] sm:$0xf]
        %v220 = vld [vmem:[%s184 + $0x8] sm:$0xf]
        %v221 = vld [vmem:[%s184 + $0xc] sm:$0xf]
        %v222 = vld [vmem:[%s184 + $0x10] sm:$0xf]
        %v223 = vld [vmem:[%s184 + $0x14] sm:$0xf]
        %v224 = vld [vmem:[%s184 + $0x18] sm:$0xf]
        %v225 = vld [vmem:[%s184 + $0x1c] sm:$0xf]
        %vm226 = vcmask 1043456
        %v227 = vsel %vm226, %v218, 0.0
        %v228 = vrot.slane %v227, 4
        %v229 = vadd.f32 %v227, %v228
        %v230 = vrot.slane %v229, 2
        %v231 = vadd.f32 %v229, %v230
        %v232 = vrot.slane %v231, 1
        %v233 = vadd.f32 %v231, %v232
        %v234 = vsel %vm226, %v219, 0.0
        %v235 = vrot.slane %v234, 4
        %v236 = vadd.f32 %v234, %v235
        %v237 = vrot.slane %v236, 2
        %v238 = vadd.f32 %v236, %v237
        %v239 = vrot.slane %v238, 1
        %v240 = vadd.f32 %v238, %v239
        %v241 = vsel %vm226, %v220, 0.0
        %v242 = vrot.slane %v241, 4
        %v243 = vadd.f32 %v241, %v242
        %v244 = vrot.slane %v243, 2
        %v245 = vadd.f32 %v243, %v244
        %v246 = vrot.slane %v245, 1
        %v247 = vadd.f32 %v245, %v246
        %v248 = vsel %vm226, %v221, 0.0
        %v249 = vrot.slane %v248, 4
        %v250 = vadd.f32 %v248, %v249
        %v251 = vrot.slane %v250, 2
        %v252 = vadd.f32 %v250, %v251
        %v253 = vrot.slane %v252, 1
        %v254 = vadd.f32 %v252, %v253
        %v255 = vsel %vm226, %v222, 0.0
        %v256 = vrot.slane %v255, 4
        %v257 = vadd.f32 %v255, %v256
        %v258 = vrot.slane %v257, 2
        %v259 = vadd.f32 %v257, %v258
        %v260 = vrot.slane %v259, 1
        %v261 = vadd.f32 %v259, %v260
        %v262 = vsel %vm226, %v223, 0.0
        %v263 = vrot.slane %v262, 4
        %v264 = vadd.f32 %v262, %v263
        %v265 = vrot.slane %v264, 2
        %v266 = vadd.f32 %v264, %v265
        %v267 = vrot.slane %v266, 1
        %v268 = vadd.f32 %v266, %v267
        %v269 = vsel %vm226, %v224, 0.0
        %v270 = vrot.slane %v269, 4
        %v271 = vadd.f32 %v269, %v270
        %v272 = vrot.slane %v271, 2
        %v273 = vadd.f32 %v271, %v272
        %v274 = vrot.slane %v273, 1
        %v275 = vadd.f32 %v273, %v274
        %v276 = vsel %vm226, %v225, 0.0
        %v277 = vrot.slane %v276, 4
        %v278 = vadd.f32 %v276, %v277
        %v279 = vrot.slane %v278, 2
        %v280 = vadd.f32 %v278, %v279
        %v281 = vrot.slane %v280, 1
        %v282 = vadd.f32 %v280, %v281
        %v283 = vmul.f32 %v233, 0.25
        %v284 = vmul.f32 %v240, 0.25
        %v285 = vmul.f32 %v247, 0.25
        %v286 = vmul.f32 %v254, 0.25
        %v287 = vmul.f32 %v261, 0.25
        %v288 = vmul.f32 %v268, 0.25
        %v289 = vmul.f32 %v275, 0.25
        %v290 = vmul.f32 %v282, 0.25
        %v291 = vsel %vm226, %v218, -inf
        %v292 = vrot.slane %v291, 4
        %v293 = vmax.f32 %v291, %v292
        %v294 = vrot.slane %v293, 2
        %v295 = vmax.f32 %v293, %v294
        %v296 = vrot.slane %v295, 1
        %v297 = vmax.f32 %v295, %v296
        %v298 = vsel %vm226, %v219, -inf
        %v299 = vrot.slane %v298, 4
        %v300 = vmax.f32 %v298, %v299
        %v301 = vrot.slane %v300, 2
        %v302 = vmax.f32 %v300, %v301
        %v303 = vrot.slane %v302, 1
        %v304 = vmax.f32 %v302, %v303
        %v305 = vsel %vm226, %v220, -inf
        %v306 = vrot.slane %v305, 4
        %v307 = vmax.f32 %v305, %v306
        %v308 = vrot.slane %v307, 2
        %v309 = vmax.f32 %v307, %v308
        %v310 = vrot.slane %v309, 1
        %v311 = vmax.f32 %v309, %v310
        %v312 = vsel %vm226, %v221, -inf
        %v313 = vrot.slane %v312, 4
        %v314 = vmax.f32 %v312, %v313
        %v315 = vrot.slane %v314, 2
        %v316 = vmax.f32 %v314, %v315
        %v317 = vrot.slane %v316, 1
        %v318 = vmax.f32 %v316, %v317
        %v319 = vsel %vm226, %v222, -inf
        %v320 = vrot.slane %v319, 4
        %v321 = vmax.f32 %v319, %v320
        %v322 = vrot.slane %v321, 2
        %v323 = vmax.f32 %v321, %v322
        %v324 = vrot.slane %v323, 1
        %v325 = vmax.f32 %v323, %v324
        %v326 = vsel %vm226, %v223, -inf
        %v327 = vrot.slane %v326, 4
        %v328 = vmax.f32 %v326, %v327
        %v329 = vrot.slane %v328, 2
        %v330 = vmax.f32 %v328, %v329
        %v331 = vrot.slane %v330, 1
        %v332 = vmax.f32 %v330, %v331
        %v333 = vsel %vm226, %v224, -inf
        %v334 = vrot.slane %v333, 4
        %v335 = vmax.f32 %v333, %v334
        %v336 = vrot.slane %v335, 2
        %v337 = vmax.f32 %v335, %v336
        %v338 = vrot.slane %v337, 1
        %v339 = vmax.f32 %v337, %v338
        %v340 = vsel %vm226, %v225, -inf
        %v341 = vrot.slane %v340, 4
        %v342 = vmax.f32 %v340, %v341
        %v343 = vrot.slane %v342, 2
        %v344 = vmax.f32 %v342, %v343
        %v345 = vrot.slane %v344, 1
        %v346 = vmax.f32 %v344, %v345
        %vm355 = vcmask 1041409
        %v356 = vsel %vm355, %v284, %v283
        %vm357 = vcmask 1042434
        %v358 = vsel %vm357, %v285, %v356
        %vm359 = vcmask 1043459
        %v360 = vsel %vm359, %v286, %v358
        %vm361 = vcmask 1044484
        %v362 = vsel %vm361, %v287, %v360
        %vm363 = vcmask 1045509
        %v364 = vsel %vm363, %v288, %v362
        %vm365 = vcmask 1046534
        %v366 = vsel %vm365, %v289, %v364
        %vm367 = vcmask 1047559
        %v368 = vsel %vm367, %v290, %v366
        %v378 = vsel %vm355, %v304, %v297
        %v379 = vsel %vm357, %v311, %v378
        %v380 = vsel %vm359, %v318, %v379
        %v381 = vsel %vm361, %v325, %v380
        %v382 = vsel %vm363, %v332, %v381
        %v383 = vsel %vm365, %v339, %v382
        %v384 = vsel %vm367, %v346, %v383
        %v386 = vlaneseq
        %v387 = vand.u32 %v386, 127
        %vm388 = vcmp.ge.s32.totalorder %v387, 1
        %389 = vrot.lane.b32.xlu0 %v368, 1
        %v390 = vpop.permute.xlu0 %389
        %391 = vrot.lane.b32.xlu0 %v384, 1
        %v392 = vpop.permute.xlu0 %391
        %v393 = vsel %vm388, %v390, 0.0
        %v394 = vsel %vm388, %v392, 0.0
        %vm395 = vcmp.le.s32.totalorder %v387, 126
        %396 = vrot.lane.b32.xlu0 %v368, 127
        %v397 = vpop.permute.xlu0 %396
        %398 = vrot.lane.b32.xlu0 %v384, 127
        %v399 = vpop.permute.xlu0 %398
        %v400 = vsel %vm395, %v397, 0.0
        %v401 = vsel %vm395, %v399, 0.0
        %s402 = sld [smem:[#allocation6]]
        %v403 = vstv %s402
        %v404 = vmul.f32 %v393, %v403
        %s405 = sld [smem:[#allocation6 + $0x1]]
        %v406 = vstv %s405
        %v407 = vmul.f32 %v368, %v406
        %v408 = vadd.f32 %v404, %v407
        %s409 = sld [smem:[#allocation6 + $0x2]]
        %v410 = vstv %s409
        %v411 = vmul.f32 %v400, %v410
        %v412 = vadd.f32 %v408, %v411
        %s413 = sld [smem:[#allocation6 + $0x3]]
        %v414 = vstv %s413
        %v415 = vmul.f32 %v394, %v414
        %v416 = vadd.f32 %v412, %v415
        %s417 = sld [smem:[#allocation6 + $0x4]]
        %v418 = vstv %s417
        %v419 = vmul.f32 %v384, %v418
        %v420 = vadd.f32 %v416, %v419
        %s421 = sld [smem:[#allocation6 + $0x5]]
        %v422 = vstv %s421
        %v423 = vmul.f32 %v401, %v422
        %v424 = vadd.f32 %v420, %v423
        %s425 = sld [smem:[#allocation7]]
        %v426 = vstv %s425
        %v427 = vadd.f32 %v424, %v426
        %v428 = vxor.u32 %v427, 2147483648
        %v429 = vmul.f32 %v428, 1.442695
        %v430 = vpow.pop %v429
        %v431 = vadd.f32 %v430, 1.0
        %v432 = vrcp.pop %v431
        %v433 = vmul.f32 1.0, %v432
        %v435 = vcombine.high %v433, %v433
        %v437 = vunpack.c.l.s4 1966171168
        %v438 = vunpack.c.0.s8 %v437
        %v439 = vlaneseq
        %v440 = vshrl.u32 %v439, 7
        %v441 = vsub.s32 %v438, %v440
        %v442 = vrot.slane %v433, %v441
        %v444 = vunpack.c.l.s4 1966171168
        %v445 = vunpack.c.0.s8 %v444
        %v446 = vlaneseq
        %v447 = vshrl.u32 %v446, 7
        %v448 = vsub.s32 %v445, %v447
        %v449 = vrot.slane %v435, %v448
        %v450 = vcombine.high %v442, %v442
        %v451 = vcombine.high %v449, %v449
        %v453 = vunpack.c.l.s4 1966171168
        %v454 = vunpack.c.0.s8 %v453
        %v455 = vlaneseq
        %v456 = vshrl.u32 %v455, 7
        %v457 = vsub.s32 %v454, %v456
        %v458 = vrot.slane %v442, %v457
        %v460 = vunpack.c.l.s4 1966171168
        %v461 = vunpack.c.0.s8 %v460
        %v462 = vlaneseq
        %v463 = vshrl.u32 %v462, 7
        %v464 = vsub.s32 %v461, %v463
        %v465 = vrot.slane %v449, %v464
        %v467 = vunpack.c.l.s4 1966171168
        %v468 = vunpack.c.0.s8 %v467
        %v469 = vlaneseq
        %v470 = vshrl.u32 %v469, 7
        %v471 = vsub.s32 %v468, %v470
        %v472 = vrot.slane %v450, %v471
        %v474 = vunpack.c.l.s4 1966171168
        %v475 = vunpack.c.0.s8 %v474
        %v476 = vlaneseq
        %v477 = vshrl.u32 %v476, 7
        %v478 = vsub.s32 %v475, %v477
        %v479 = vrot.slane %v451, %v478
        %v480 = vcombine.high %v458, %v458
        %v481 = vcombine.high %v465, %v465
        %v482 = vcombine.high %v472, %v472
        %v483 = vcombine.high %v479, %v479
        %s492 = sld [smem:[#allocation6 + $0x6]]
        %v493 = vstv %s492
        %v494 = vmul.f32 %v393, %v493
        %s495 = sld [smem:[#allocation6 + $0x7]]
        %v496 = vstv %s495
        %v497 = vmul.f32 %v368, %v496
        %v498 = vadd.f32 %v494, %v497
        %s499 = sld [smem:[#allocation6 + $0x8]]
        %v500 = vstv %s499
        %v501 = vmul.f32 %v400, %v500
        %v502 = vadd.f32 %v498, %v501
        %s503 = sld [smem:[#allocation6 + $0x9]]
        %v504 = vstv %s503
        %v505 = vmul.f32 %v394, %v504
        %v506 = vadd.f32 %v502, %v505
        %s507 = sld [smem:[#allocation6 + $0xa]]
        %v508 = vstv %s507
        %v509 = vmul.f32 %v384, %v508
        %v510 = vadd.f32 %v506, %v509
        %s511 = sld [smem:[#allocation6 + $0xb]]
        %v512 = vstv %s511
        %v513 = vmul.f32 %v401, %v512
        %v514 = vadd.f32 %v510, %v513
        %s515 = sld [smem:[#allocation7 + $0x1]]
        %v516 = vstv %s515
        %v517 = vadd.f32 %v514, %v516
        %v518 = vxor.u32 %v517, 2147483648
        %v519 = vmul.f32 %v518, 1.442695
        %v520 = vpow.pop %v519
        %v521 = vadd.f32 %v520, 1.0
        %v522 = vrcp.pop %v521
        %v523 = vmul.f32 1.0, %v522
        %v525 = vcombine.high %v523, %v523
        %v527 = vunpack.c.l.s4 1966171168
        %v528 = vunpack.c.0.s8 %v527
        %v529 = vlaneseq
        %v530 = vshrl.u32 %v529, 7
        %v531 = vsub.s32 %v528, %v530
        %v532 = vrot.slane %v523, %v531
        %v534 = vunpack.c.l.s4 1966171168
        %v535 = vunpack.c.0.s8 %v534
        %v536 = vlaneseq
        %v537 = vshrl.u32 %v536, 7
        %v538 = vsub.s32 %v535, %v537
        %v539 = vrot.slane %v525, %v538
        %v540 = vcombine.high %v532, %v532
        %v541 = vcombine.high %v539, %v539
        %v543 = vunpack.c.l.s4 1966171168
        %v544 = vunpack.c.0.s8 %v543
        %v545 = vlaneseq
        %v546 = vshrl.u32 %v545, 7
        %v547 = vsub.s32 %v544, %v546
        %v548 = vrot.slane %v532, %v547
        %v550 = vunpack.c.l.s4 1966171168
        %v551 = vunpack.c.0.s8 %v550
        %v552 = vlaneseq
        %v553 = vshrl.u32 %v552, 7
        %v554 = vsub.s32 %v551, %v553
        %v555 = vrot.slane %v539, %v554
        %v557 = vunpack.c.l.s4 1966171168
        %v558 = vunpack.c.0.s8 %v557
        %v559 = vlaneseq
        %v560 = vshrl.u32 %v559, 7
        %v561 = vsub.s32 %v558, %v560
        %v562 = vrot.slane %v540, %v561
        %v564 = vunpack.c.l.s4 1966171168
        %v565 = vunpack.c.0.s8 %v564
        %v566 = vlaneseq
        %v567 = vshrl.u32 %v566, 7
        %v568 = vsub.s32 %v565, %v567
        %v569 = vrot.slane %v541, %v568
        %v570 = vcombine.high %v548, %v548
        %v571 = vcombine.high %v555, %v555
        %v572 = vcombine.high %v562, %v562
        %v573 = vcombine.high %v569, %v569
        %s574 = sld [smem:[#allocation6 + $0xc]]
        %v575 = vstv %s574
        %v576 = vmul.f32 %v393, %v575
        %s577 = sld [smem:[#allocation6 + $0xd]]
        %v578 = vstv %s577
        %v579 = vmul.f32 %v368, %v578
        %v580 = vadd.f32 %v576, %v579
        %s581 = sld [smem:[#allocation6 + $0xe]]
        %v582 = vstv %s581
        %v583 = vmul.f32 %v400, %v582
        %v584 = vadd.f32 %v580, %v583
        %s585 = sld [smem:[#allocation6 + $0xf]]
        %v586 = vstv %s585
        %v587 = vmul.f32 %v394, %v586
        %v588 = vadd.f32 %v584, %v587
        %s589 = sld [smem:[#allocation6 + $0x10]]
        %v590 = vstv %s589
        %v591 = vmul.f32 %v384, %v590
        %v592 = vadd.f32 %v588, %v591
        %s593 = sld [smem:[#allocation6 + $0x11]]
        %v594 = vstv %s593
        %v595 = vmul.f32 %v401, %v594
        %v596 = vadd.f32 %v592, %v595
        %s597 = sld [smem:[#allocation7 + $0x2]]
        %v598 = vstv %s597
        %v599 = vadd.f32 %v596, %v598
        %v600 = vxor.u32 %v599, 2147483648
        %v601 = vmul.f32 %v600, 1.442695
        %v602 = vpow.pop %v601
        %v603 = vadd.f32 %v602, 1.0
        %v604 = vrcp.pop %v603
        %v605 = vmul.f32 1.0, %v604
        %v607 = vcombine.high %v605, %v605
        %v609 = vunpack.c.l.s4 1966171168
        %v610 = vunpack.c.0.s8 %v609
        %v611 = vlaneseq
        %v612 = vshrl.u32 %v611, 7
        %v613 = vsub.s32 %v610, %v612
        %v614 = vrot.slane %v605, %v613
        %v616 = vunpack.c.l.s4 1966171168
        %v617 = vunpack.c.0.s8 %v616
        %v618 = vlaneseq
        %v619 = vshrl.u32 %v618, 7
        %v620 = vsub.s32 %v617, %v619
        %v621 = vrot.slane %v607, %v620
        %v622 = vcombine.high %v614, %v614
        %v623 = vcombine.high %v621, %v621
        %v625 = vunpack.c.l.s4 1966171168
        %v626 = vunpack.c.0.s8 %v625
        %v627 = vlaneseq
        %v628 = vshrl.u32 %v627, 7
        %v629 = vsub.s32 %v626, %v628
        %v630 = vrot.slane %v614, %v629
        %v632 = vunpack.c.l.s4 1966171168
        %v633 = vunpack.c.0.s8 %v632
        %v634 = vlaneseq
        %v635 = vshrl.u32 %v634, 7
        %v636 = vsub.s32 %v633, %v635
        %v637 = vrot.slane %v621, %v636
        %v639 = vunpack.c.l.s4 1966171168
        %v640 = vunpack.c.0.s8 %v639
        %v641 = vlaneseq
        %v642 = vshrl.u32 %v641, 7
        %v643 = vsub.s32 %v640, %v642
        %v644 = vrot.slane %v622, %v643
        %v646 = vunpack.c.l.s4 1966171168
        %v647 = vunpack.c.0.s8 %v646
        %v648 = vlaneseq
        %v649 = vshrl.u32 %v648, 7
        %v650 = vsub.s32 %v647, %v649
        %v651 = vrot.slane %v623, %v650
        %v652 = vcombine.high %v630, %v630
        %v653 = vcombine.high %v637, %v637
        %v654 = vcombine.high %v644, %v644
        %v655 = vcombine.high %v651, %v651
        %s656 = sld [smem:[#allocation6 + $0x12]]
        %v657 = vstv %s656
        %v658 = vmul.f32 %v393, %v657
        %s659 = sld [smem:[#allocation6 + $0x13]]
        %v660 = vstv %s659
        %v661 = vmul.f32 %v368, %v660
        %v662 = vadd.f32 %v658, %v661
        %s663 = sld [smem:[#allocation6 + $0x14]]
        %v664 = vstv %s663
        %v665 = vmul.f32 %v400, %v664
        %v666 = vadd.f32 %v662, %v665
        %s667 = sld [smem:[#allocation6 + $0x15]]
        %v668 = vstv %s667
        %v669 = vmul.f32 %v394, %v668
        %v670 = vadd.f32 %v666, %v669
        %s671 = sld [smem:[#allocation6 + $0x16]]
        %v672 = vstv %s671
        %v673 = vmul.f32 %v384, %v672
        %v674 = vadd.f32 %v670, %v673
        %s675 = sld [smem:[#allocation6 + $0x17]]
        %v676 = vstv %s675
        %v677 = vmul.f32 %v401, %v676
        %v678 = vadd.f32 %v674, %v677
        %s679 = sld [smem:[#allocation7 + $0x3]]
        %v680 = vstv %s679
        %v681 = vadd.f32 %v678, %v680
        %v682 = vxor.u32 %v681, 2147483648
        %v683 = vmul.f32 %v682, 1.442695
        %v684 = vpow.pop %v683
        %v685 = vadd.f32 %v684, 1.0
        %v686 = vrcp.pop %v685
        %v687 = vmul.f32 1.0, %v686
        %v689 = vcombine.high %v687, %v687
        %v691 = vunpack.c.l.s4 1966171168
        %v692 = vunpack.c.0.s8 %v691
        %v693 = vlaneseq
        %v694 = vshrl.u32 %v693, 7
        %v695 = vsub.s32 %v692, %v694
        %v696 = vrot.slane %v687, %v695
        %v698 = vunpack.c.l.s4 1966171168
        %v699 = vunpack.c.0.s8 %v698
        %v700 = vlaneseq
        %v701 = vshrl.u32 %v700, 7
        %v702 = vsub.s32 %v699, %v701
        %v703 = vrot.slane %v689, %v702
        %v704 = vcombine.high %v696, %v696
        %v705 = vcombine.high %v703, %v703
        %v707 = vunpack.c.l.s4 1966171168
        %v708 = vunpack.c.0.s8 %v707
        %v709 = vlaneseq
        %v710 = vshrl.u32 %v709, 7
        %v711 = vsub.s32 %v708, %v710
        %v712 = vrot.slane %v696, %v711
        %v714 = vunpack.c.l.s4 1966171168
        %v715 = vunpack.c.0.s8 %v714
        %v716 = vlaneseq
        %v717 = vshrl.u32 %v716, 7
        %v718 = vsub.s32 %v715, %v717
        %v719 = vrot.slane %v703, %v718
        %v721 = vunpack.c.l.s4 1966171168
        %v722 = vunpack.c.0.s8 %v721
        %v723 = vlaneseq
        %v724 = vshrl.u32 %v723, 7
        %v725 = vsub.s32 %v722, %v724
        %v726 = vrot.slane %v704, %v725
        %v728 = vunpack.c.l.s4 1966171168
        %v729 = vunpack.c.0.s8 %v728
        %v730 = vlaneseq
        %v731 = vshrl.u32 %v730, 7
        %v732 = vsub.s32 %v729, %v731
        %v733 = vrot.slane %v705, %v732
        %v734 = vcombine.high %v712, %v712
        %v735 = vcombine.high %v719, %v719
        %v736 = vcombine.high %v726, %v726
        %v737 = vcombine.high %v733, %v733
        %v738 = vlaneseq
        %v739 = vshrl.u32 %v738, 7
        %v740 = vsub.s32 0, %v739
        %v741 = vrot.slane %v548, %v740
        %v742 = vlaneseq
        %v743 = vshrl.u32 %v742, 7
        %v744 = vsub.s32 0, %v743
        %v745 = vrot.slane %v562, %v744
        %v746 = vlaneseq
        %v747 = vshrl.u32 %v746, 7
        %v748 = vsub.s32 0, %v747
        %v749 = vrot.slane %v570, %v748
        %v750 = vlaneseq
        %v751 = vshrl.u32 %v750, 7
        %v752 = vsub.s32 0, %v751
        %v753 = vrot.slane %v572, %v752
        %v754 = vlaneseq
        %v755 = vshrl.u32 %v754, 7
        %v756 = vsub.s32 0, %v755
        %v757 = vrot.slane %v555, %v756
        %v758 = vlaneseq
        %v759 = vshrl.u32 %v758, 7
        %v760 = vsub.s32 0, %v759
        %v761 = vrot.slane %v569, %v760
        %v762 = vlaneseq
        %v763 = vshrl.u32 %v762, 7
        %v764 = vsub.s32 0, %v763
        %v765 = vrot.slane %v571, %v764
        %v766 = vlaneseq
        %v767 = vshrl.u32 %v766, 7
        %v768 = vsub.s32 0, %v767
        %v769 = vrot.slane %v573, %v768
        %v778 = vlaneseq
        %v779 = vshrl.u32 %v778, 7
        %v780 = vsub.s32 0, %v779
        %v781 = vrot.slane %v630, %v780
        %v782 = vlaneseq
        %v783 = vshrl.u32 %v782, 7
        %v784 = vsub.s32 0, %v783
        %v785 = vrot.slane %v644, %v784
        %v786 = vlaneseq
        %v787 = vshrl.u32 %v786, 7
        %v788 = vsub.s32 0, %v787
        %v789 = vrot.slane %v652, %v788
        %v790 = vlaneseq
        %v791 = vshrl.u32 %v790, 7
        %v792 = vsub.s32 0, %v791
        %v793 = vrot.slane %v654, %v792
        %v794 = vlaneseq
        %v795 = vshrl.u32 %v794, 7
        %v796 = vsub.s32 0, %v795
        %v797 = vrot.slane %v637, %v796
        %v798 = vlaneseq
        %v799 = vshrl.u32 %v798, 7
        %v800 = vsub.s32 0, %v799
        %v801 = vrot.slane %v651, %v800
        %v802 = vlaneseq
        %v803 = vshrl.u32 %v802, 7
        %v804 = vsub.s32 0, %v803
        %v805 = vrot.slane %v653, %v804
        %v806 = vlaneseq
        %v807 = vshrl.u32 %v806, 7
        %v808 = vsub.s32 0, %v807
        %v809 = vrot.slane %v655, %v808
        %v818 = vlaneseq
        %v819 = vshrl.u32 %v818, 7
        %v820 = vsub.s32 0, %v819
        %v821 = vrot.slane %v712, %v820
        %v822 = vlaneseq
        %v823 = vshrl.u32 %v822, 7
        %v824 = vsub.s32 0, %v823
        %v825 = vrot.slane %v726, %v824
        %v826 = vlaneseq
        %v827 = vshrl.u32 %v826, 7
        %v828 = vsub.s32 0, %v827
        %v829 = vrot.slane %v734, %v828
        %v830 = vlaneseq
        %v831 = vshrl.u32 %v830, 7
        %v832 = vsub.s32 0, %v831
        %v833 = vrot.slane %v736, %v832
        %v834 = vlaneseq
        %v835 = vshrl.u32 %v834, 7
        %v836 = vsub.s32 0, %v835
        %v837 = vrot.slane %v719, %v836
        %v838 = vlaneseq
        %v839 = vshrl.u32 %v838, 7
        %v840 = vsub.s32 0, %v839
        %v841 = vrot.slane %v733, %v840
        %v842 = vlaneseq
        %v843 = vshrl.u32 %v842, 7
        %v844 = vsub.s32 0, %v843
        %v845 = vrot.slane %v735, %v844
        %v846 = vlaneseq
        %v847 = vshrl.u32 %v846, 7
        %v848 = vsub.s32 0, %v847
        %v849 = vrot.slane %v737, %v848
        %vm858 = vcmask 1040384
        %v859 = vsel %vm858, %v458, %v741
        %v860 = vsel %vm858, %v472, %v745
        %v861 = vsel %vm858, %v480, %v749
        %v862 = vsel %vm858, %v482, %v753
        %v863 = vsel %vm858, %v465, %v757
        %v864 = vsel %vm858, %v479, %v761
        %v865 = vsel %vm858, %v481, %v765
        %v866 = vsel %vm858, %v483, %v769
        %vm867 = vcmask 1041408
        %v868 = vsel %vm867, %v859, %v781
        %v869 = vsel %vm867, %v860, %v785
        %v870 = vsel %vm867, %v861, %v789
        %v871 = vsel %vm867, %v862, %v793
        %v872 = vsel %vm867, %v863, %v797
        %v873 = vsel %vm867, %v864, %v801
        %v874 = vsel %vm867, %v865, %v805
        %v875 = vsel %vm867, %v866, %v809
        %vm876 = vcmask 1042432
        %v877 = vsel %vm876, %v868, %v821
        %v878 = vsel %vm876, %v869, %v825
        %v879 = vsel %vm876, %v870, %v829
        %v880 = vsel %vm876, %v871, %v833
        %v881 = vsel %vm876, %v872, %v837
        %v882 = vsel %vm876, %v873, %v841
        %v883 = vsel %vm876, %v874, %v845
        %v884 = vsel %vm876, %v875, %v849
        %885 = vst [vmem:[%s215] sm:$0xf] %v877
        %886 = vst [vmem:[%s215 + $0x4] sm:$0xf] %v878
        %887 = vst [vmem:[%s215 + $0x8] sm:$0xf] %v879
        %888 = vst [vmem:[%s215 + $0xc] sm:$0xf] %v880
        %889 = vst [vmem:[%s215 + $0x10] sm:$0xf] %v881
        %890 = vst [vmem:[%s215 + $0x14] sm:$0xf] %v882
        %891 = vst [vmem:[%s215 + $0x18] sm:$0xf] %v883
        %892 = vst [vmem:[%s215 + $0x1c] sm:$0xf] %v884
        %s893 = sand.u32 %s98, 1
        %s894 = scalar_lea.sflag [#allocation4], %s893
        %s895 = sand.u32 %s98, 1
        %s896 = smul.addr %s895, 32
        %s897 = scalar_lea.vmem [#allocation9], %s896
        // Predicated region
        $region45: #{tpu_custom_call.1} parent=31 // pred_check
          %p898 = pneg %p108
        $region46: #{tpu_custom_call.1} parent=31 // pred_check_branch
          %900 = sbr.rel (%p898) target = $region48
        $region47: #{tpu_custom_call.1} parent=31 // pred_region
          %s901 = smul.u32 8, %s22
          %s903 = ssub.s32 512, 512
          %904 = vsyncadd %s894, %s903
          %s905 = smul.addr %s901, 64
          %s906 = scalar_lea.hbm %s3, %s905
          %s907 = sshll.u32 %s897, 4
          %s908 = int_to_ptr.vmem [resolvable:$true] %s907
          %913 = dma.vmem_to_hbm [thread:$0]  %s908, 512, %s906, %s894, 64, 64, 4
        $region48: #{tpu_custom_call.1} parent=31 // pred_fallthru
          _
      $region32: #{tpu_custom_call.1} parent=5 // pred_fallthru
        _
      %p914 = scmp.le.s32.totalorder 2, %s17
      // Predicated region
      $region49: #{tpu_custom_call.1} parent=5 // pred_check
        %p915 = pneg %p914
      $region50: #{tpu_custom_call.1} parent=5 // pred_check_branch
        %917 = sbr.rel (%p915) target = $region52
      $region51: #{tpu_custom_call.1} parent=5 // pred_region
        %s918 = ssub.s32 %s17, 2
        // Predicated region
        $region53: #{tpu_custom_call.1} parent=51 // pred_check
          %p919 = pneg %p114
        $region54: #{tpu_custom_call.1} parent=51 // pred_check_branch
          %921 = sbr.rel (%p919) target = $region56
        $region55: #{tpu_custom_call.1} parent=51 // pred_region
          %s922 = sand.u32 %s99, 1
          %s923 = scalar_lea.sflag [#allocation4], %s922
          %s924 = sand.u32 %s99, 1
          %s925 = smul.addr %s924, 32
          %s926 = scalar_lea.vmem [#allocation9], %s925
          %927 = dma.done %s923, 512
        $region56: #{tpu_custom_call.1} parent=51 // pred_fallthru
          _
      $region52: #{tpu_custom_call.1} parent=5 // pred_fallthru
        _
    $region6: #{tpu_custom_call.1} parent=1 // loop_footer
      %s21 = sadd.s32 1, %s17
    $region7: #{tpu_custom_call.1} parent=1 // loop_footer_branch
      %16 = sbr.rel target = $region3
    $region8: #{tpu_custom_call.1} parent=1 // loop_exit
      _
    %928 = vsyncpa [#allocation3], 1
    %s929 = scalar_lea.sflag [#allocation3], 1
    %930 = vsyncpa %s929, 1
    %931 = vsyncpa [#allocation4], 1
    %s932 = scalar_lea.sflag [#allocation4], 1
    %933 = vsyncpa %s932, 1
    %934 = vsyncpa [#allocation5], 1
    %s935 = scalar_lea.sflag [#allocation5], 1
    %936 = vsyncpa %s935, 1
    %937 = vsyncpa [#allocation8], 1

</llo_original>
